<compile_context>
chip_gen: v7x
topology: tpu7x:2x2x1
jax: 0.10.0
libtpu: 0.0.40
codegen_flags: <defaults>
</compile_context>

<pallas_src>
import functools

import jax
import jax.numpy as jnp
from jax.experimental import pallas as pl
from jax.experimental.pallas import tpu as pltpu


def _round_up(x: int, m: int) -> int:
    return (x + m - 1) // m * m


def _upcast_linear_kernel(x_ref, w_ref, b_ref, o_ref, *, scale: float):
    """One (i, j, k) grid step of out = (x @ w) * scale + b_scaled."""
    k = pl.program_id(2)

    # Output block is resident across the K ("arbitrary") axis: accumulate
    # straight into it (no separate VMEM acc scratch).
    @pl.when(k == 0)
    def _init():
        o_ref[...] = jnp.zeros_like(o_ref)

    o_ref[...] += jnp.dot(
        x_ref[...], w_ref[...], preferred_element_type=jnp.float32
    )

    # Up-cast semantics + scale + (pre-scaled) bias, once per output tile.
    # `scale` is a Python float -> lowered as a literal, not a captured array.
    @pl.when(k == pl.num_programs(2) - 1)
    def _finalize():
        o_ref[...] = o_ref[...] * scale + b_ref[...]


@functools.partial(jax.jit, static_argnames=("scale", "n", "tn", "tk", "tm"))
def upcast_linear(x, w, b_scaled, *, scale: float, n: int, tn: int, tk: int,
                  tm: int = 512):
    """x: [M, K]; w: [Kp, Np] pre-padded bf16; b_scaled: [1, Np] f32 = b*scale.

    Returns float32 [M, n] = (x @ w[:K, :n] + b[:n]) * scale.
    """
    M, K = x.shape
    Kp, Np = w.shape

    # bf16 operands into the MXU (f32 operands multiply MXU passes & HBM bytes;
    # v7x MXU has no f32 input path). Accumulation stays f32.
    xp = x.astype(jnp.bfloat16)

    tm = min(tm, _round_up(M, 8))
    Mp = _round_up(M, tm)

    # v7x megacore: keep >= 2 output tiles on the parallel (i, j) axes so the
    # second TensorCore is not idle. Prefer splitting N, else M.
    if (Mp // tm) * (Np // tn) == 1:
        if tn >= 256:
            tn //= 2
        elif M > 8:
            tm = _round_up(max(M // 2, 1), 8)
            Mp = _round_up(M, tm)

    if (Mp, Kp) != (M, K):
        xp = jnp.pad(xp, ((0, Mp - M), (0, Kp - K)))

    grid = (Mp // tm, Np // tn, Kp // tk)
    grid_m, grid_n, _ = grid

    # VMEM footprint: double-buffered bf16 inputs + double-buffered f32 output
    # block + bias slab (sublane-padded). Set the scoped limit accordingly
    # (v5e default is 16 MiB; stay <= v7x's 64 MiB physical).
    footprint = (
        2 * (tm * tk + tk * tn) * 2   # x, w blocks (bf16, double-buffered)
        + 2 * tm * tn * 4             # f32 output block (double-buffered)
        + 2 * 8 * tn * 4              # bias slab
    )
    vmem_limit = int(min(64 * 2**20, max(32 * 2**20, footprint + 8 * 2**20)))

    cost = pl.CostEstimate(
        flops=2 * Mp * Np * Kp,
        transcendentals=0,
        bytes_accessed=(
            grid_n * Mp * Kp * 2      # x re-streamed once per j tile
            + grid_m * Kp * Np * 2    # w re-streamed once per i tile
            + grid_m * Np * 4         # bias
            + Mp * Np * 4             # f32 output
        ),
    )

    out = pl.pallas_call(
        functools.partial(_upcast_linear_kernel, scale=scale),
        out_shape=jax.ShapeDtypeStruct((Mp, Np), jnp.float32),
        grid=grid,
        in_specs=[
            pl.BlockSpec((tm, tk), lambda i, j, k: (i, k)),
            pl.BlockSpec((tk, tn), lambda i, j, k: (k, j)),
            pl.BlockSpec((1, tn), lambda i, j, k: (0, j)),
        ],
        out_specs=pl.BlockSpec((tm, tn), lambda i, j, k: (i, j)),
        compiler_params=pltpu.CompilerParams(
            dimension_semantics=("parallel", "parallel", "arbitrary"),
            vmem_limit_bytes=vmem_limit,
        ),
        cost_estimate=cost,
    )(xp, w, b_scaled)

    if (Mp, Np) != (M, n):
        out = out[:M, :n]
    return out


class UpCastWrapperPallas:
    """JAX/Pallas analogue of UpCastWrapper(nn.Linear(hidden, out), scale)."""

    def __init__(self, weight, bias, scale: float = 1.0, *,
                 tm: int = 512, tn: int = 1024, tk: int = 1024):
        # weight stored as [K, N] (already transposed vs. PyTorch's [N, K]).
        K, N = weight.shape
        self.K, self.N = K, N
        self.scale = float(scale)
        self.tm = tm

        # Tile caps: 256-aligned contraction/output tiles for v6e/v7x MXU when
        # the dimension allows, 128 minimum otherwise; tk kept large.
        self.tn = min(tn, _round_up(N, 256 if N > 128 else 128))
        self.tk = min(tk, _round_up(K, 256 if K > 128 else 128))
        Kp, Np = _round_up(K, self.tk), _round_up(N, self.tn)

        # Pre-pad / pre-cast the weight ONCE (not per forward call).
        w = weight.astype(jnp.bfloat16)
        if (Kp, Np) != (K, N):
            w = jnp.pad(w, ((0, Kp - K), (0, Np - N)))
        self.w = w

        # Pre-scale the bias in f32 so finalize is a single FMA-able op.
        b = bias.astype(jnp.float32) * self.scale
        if Np != N:
            b = jnp.pad(b, (0, Np - N))
        self.b_scaled = b.reshape(1, Np)

    def __call__(self, x):
        # x: [..., hidden] -> flatten to [M, K] for the kernel.
        lead = x.shape[:-1]
        out = upcast_linear(
            x.reshape(-1, self.K), self.w, self.b_scaled,
            scale=self.scale, n=self.N, tn=self.tn, tk=self.tk, tm=self.tm,
        )
        return out.reshape(*lead, self.N)


if __name__ == "__main__":
    key = jax.random.PRNGKey(0)
    k_x, k_w, k_b = jax.random.split(key, 3)

    batch, seq, hidden, out_dim = 2, 8, 32, 64
    scale = 2.0

    # Deterministic synthetic parameters + inputs (bf16 wrapped module).
    x = jax.random.normal(k_x, (batch, seq, hidden), dtype=jnp.float32).astype(
        jnp.bfloat16
    )
    w = (jax.random.normal(k_w, (hidden, out_dim), dtype=jnp.float32) * 0.05).astype(
        jnp.bfloat16
    )
    b = (jax.random.normal(k_b, (out_dim,), dtype=jnp.float32) * 0.05).astype(
        jnp.bfloat16
    )

    wrapper = UpCastWrapperPallas(w, b, scale=scale)
    y = wrapper(x)
    y = jax.block_until_ready(y)

    # Reference in plain JAX (module output -> float32 -> * scale).
    ref = (
        jnp.dot(
            x.reshape(-1, hidden).astype(jnp.float32), w.astype(jnp.float32)
        )
        + b.astype(jnp.float32)
    )
    ref = (ref * scale).reshape(batch, seq, out_dim)

    assert y.dtype == jnp.float32
    assert y.shape == (batch, seq, out_dim)
    assert jnp.allclose(y, ref, atol=1e-2, rtol=1e-2)

    print("KERNEL_OK")
</pallas_src>

<mosaic_0001>
module attributes {stable_mosaic.version = 11 : i64} {
  func.func @_upcast_linear_kernel(%arg0: i32, %arg1: i32, %arg2: i32, %arg3: memref<8x128xbf16, #tpu.memory_space<vmem>>, %arg4: memref<128x128xbf16, #tpu.memory_space<vmem>>, %arg5: memref<1x128xf32, #tpu.memory_space<vmem>>, %arg6: memref<8x128xf32, #tpu.memory_space<vmem>>) attributes {dimension_semantics = [#tpu.dimension_semantics<parallel>, #tpu.dimension_semantics<parallel>, #tpu.dimension_semantics<arbitrary>], iteration_bounds = array<i64: 2, 1, 1>, scalar_prefetch = 0 : i64, scratch_operands = 0 : i64, tpu.core_type = #tpu.core_type<tc>, window_params = [{transform_indices = @transform_0, window_bounds = array<i64: 8, 128>}, {transform_indices = @transform_1, window_bounds = array<i64: 128, 128>}, {transform_indices = @transform_2, window_bounds = array<i64: 1, 128>}, {transform_indices = @transform_3, window_bounds = array<i64: 8, 128>}]} {
    %c0_i32 = arith.constant 0 : i32
    %0 = arith.cmpi eq, %arg2, %c0_i32 : i32
    %1 = arith.extui %0 : i1 to i32
    %c0_i32_0 = arith.constant 0 : i32
    %2 = arith.cmpi ne, %1, %c0_i32_0 : i32
    scf.if %2 {
      %cst_10 = arith.constant 0.000000e+00 : f32
      %12 = vector.broadcast %cst_10 : f32 to vector<8x128xf32>
      %c0_11 = arith.constant 0 : index
      %c0_12 = arith.constant 0 : index
      %13 = vector.load %arg6[%c0_11, %c0_12] : memref<8x128xf32, #tpu.memory_space<vmem>>, vector<8x128xf32>
      tpu.vector_store %arg6[%c0_11, %c0_12], %12 {strides = array<i32>} : memref<8x128xf32, #tpu.memory_space<vmem>>, vector<8x128xf32>,
    } else {
    }
    %c0 = arith.constant 0 : index
    %c0_1 = arith.constant 0 : index
    %3 = vector.load %arg6[%c0, %c0_1] : memref<8x128xf32, #tpu.memory_space<vmem>>, vector<8x128xf32>
    %c0_2 = arith.constant 0 : index
    %c0_3 = arith.constant 0 : index
    %4 = vector.load %arg3[%c0_2, %c0_3] : memref<8x128xbf16, #tpu.memory_space<vmem>>, vector<8x128xbf16>
    %c0_4 = arith.constant 0 : index
    %c0_5 = arith.constant 0 : index
    %5 = vector.load %arg4[%c0_4, %c0_5] : memref<128x128xbf16, #tpu.memory_space<vmem>>, vector<128x128xbf16>
    %cst = arith.constant dense<0.000000e+00> : vector<8x128xf32>
    %6 = tpu.matmul %4, %5, %cst {dimension_numbers = #tpu.dot_dimension_numbers<[1], [0], [0], [1], [0, 0, 1, 1], [], []>} : vector<8x128xbf16>, vector<128x128xbf16>, vector<8x128xf32> -> vector<8x128xf32>
    %7 = arith.addf %3, %6 : vector<8x128xf32>
    %c0_6 = arith.constant 0 : index
    %c0_7 = arith.constant 0 : index
    %8 = vector.load %arg6[%c0_6, %c0_7] : memref<8x128xf32, #tpu.memory_space<vmem>>, vector<8x128xf32>
    tpu.vector_store %arg6[%c0_6, %c0_7], %7 {strides = array<i32>} : memref<8x128xf32, #tpu.memory_space<vmem>>, vector<8x128xf32>,
    %c0_i32_8 = arith.constant 0 : i32
    %9 = arith.cmpi eq, %arg2, %c0_i32_8 : i32
    %10 = arith.extui %9 : i1 to i32
    %c0_i32_9 = arith.constant 0 : i32
    %11 = arith.cmpi ne, %10, %c0_i32_9 : i32
    scf.if %11 {
      %c0_10 = arith.constant 0 : index
      %c0_11 = arith.constant 0 : index
      %12 = vector.load %arg6[%c0_10, %c0_11] : memref<8x128xf32, #tpu.memory_space<vmem>>, vector<8x128xf32>
      %cst_12 = arith.constant 2.000000e+00 : f32
      %13 = vector.broadcast %cst_12 : f32 to vector<8x128xf32>
      %14 = arith.mulf %12, %13 : vector<8x128xf32>
      %c0_13 = arith.constant 0 : index
      %c0_14 = arith.constant 0 : index
      %15 = vector.load %arg5[%c0_13, %c0_14] : memref<1x128xf32, #tpu.memory_space<vmem>>, vector<1x128xf32>
      %16 = vector.broadcast %15 : vector<1x128xf32> to vector<8x128xf32>
      %17 = arith.addf %14, %16 : vector<8x128xf32>
      %c0_15 = arith.constant 0 : index
      %c0_16 = arith.constant 0 : index
      %18 = vector.load %arg6[%c0_15, %c0_16] : memref<8x128xf32, #tpu.memory_space<vmem>>, vector<8x128xf32>
      tpu.vector_store %arg6[%c0_15, %c0_16], %17 {strides = array<i32>} : memref<8x128xf32, #tpu.memory_space<vmem>>, vector<8x128xf32>,
    } else {
    }
    return
  }
  func.func @transform_0(%arg0: i32, %arg1: i32, %arg2: i32) -> (i32, i32) {
    %c0_i32 = arith.constant 0 : i32
    return %arg0, %arg2 : i32, i32
  }
  func.func @transform_1(%arg0: i32, %arg1: i32, %arg2: i32) -> (i32, i32) {
    %c0_i32 = arith.constant 0 : i32
    return %arg2, %arg1 : i32, i32
  }
  func.func @transform_2(%arg0: i32, %arg1: i32, %arg2: i32) -> (i32, i32) {
    %c0_i32 = arith.constant 0 : i32
    %c0_i32_0 = arith.constant 0 : i32
    return %c0_i32, %arg1 : i32, i32
  }
  func.func @transform_3(%arg0: i32, %arg1: i32, %arg2: i32) -> (i32, i32) {
    %c0_i32 = arith.constant 0 : i32
    return %arg0, %arg1 : i32, i32
  }
}

</mosaic_0001>

<llo_original>
// kernel: upcast_linear.1
$region0: #{upcast_linear.1}
  #allocation0 [shape = 'u32[]', space=smem, size = 0x4, offset = 0x4, fixed_abs, tag = 'smem constant byte address 0x4 - core index']
  #allocation1 [shape = 'u32[144,128]{1,0:T(1,128)}', space=vmem, size = 0x12000, scoped, tag = 'internal scratch']
  %s0 = inlined_call_operand.vmem [shape: bf16[16,128], index: 0, kind: input, shape index: {}]
  %s1 = inlined_call_operand.hbm [shape: bf16[128,128], index: 1, kind: input, shape index: {}]
  %s2 = inlined_call_operand.vmem [shape: f32[1,128], index: 2, kind: input, shape index: {}]
  %s3 = inlined_call_operand.hbm [shape: f32[16,128], index: 3, kind: output, shape index: {}]
  %s4 = sld [smem:[#allocation0]]
  $region57: #{upcast_linear.1} parent=0
    _
  %s6 = ssub.s32 1, %s4
  %s7 = scalar_select 0, %s6, %s4
  $region1: #{upcast_linear.1} parent=0
    #allocation2 [shape = 'u8[32768]{0}', space=vmem, size = 0x8000, scoped, tag = 'input window, operand 1, single buffered']
    #allocation3 [shape = 's32[2]{0}', space=sflag, size = 0x8, scoped, tag = 'scoped memory for upcast_linear.1']
    #allocation4 [shape = 's32[2]{0}', space=sflag, size = 0x8, scoped, tag = 'scoped memory for upcast_linear.1']
    #allocation5 [shape = 'u8[8192]{0}', space=vmem, size = 0x2000, scoped, tag = 'output window, operand 0']
    %8 = vsyncpa [#allocation3], 0
    %9 = vsyncpa [#allocation4], 0
    %s10 = scalar_lea.sflag [#allocation4], 1
    %11 = vsyncpa %s10, 0
    loop: start=0, step=1, limit=4
    $region2: #{upcast_linear.1} parent=1 // loop_pre_header
      _
    $region3: #{upcast_linear.1} parent=1 // loop_header
      %s13 = sphi 0, %s17
      %p14 = scmp.ge.s32.totalorder %s13, 4
      %s20 = sphi 0, %s39
      %s21 = sphi 0, %s35
      %s22 = sphi 0, %s31
      %s23 = sphi 0, %s20
      %s24 = sphi 0, %s21
      %s25 = sphi 0, %s22
      %s26 = sphi 0, %s23
      %s27 = sphi 0, %s24
      %s28 = sphi 0, %s25
      %s44 = sphi 0, %s46
      %s47 = sphi 0, %s44
      %s48 = sphi 0, %s47
      %s64 = sphi 0, %s48
      %s72 = sphi 0, %s74
      %s75 = sphi 0, %s72
      %s76 = sphi 0, %s75
      %s92 = sphi 0, %s76
      %s98 = sphi 0, %s100
      %s101 = sphi 0, %s98
      %s102 = sphi 0, %s101
      %s118 = sphi 0, %s102
      %s126 = sphi 0, %s128
      %s129 = sphi 0, %s126
      %s130 = sphi 0, %s129
      %s146 = sphi 0, %s130
    $region4: #{upcast_linear.1} parent=1 // loop_header_branch
      %16 = sbr.rel (%p14) target = $region8
    $region5: #{upcast_linear.1} parent=1 // loop_body
      %s18 = ssub.s32 %s13, 1
      %s19 = ssub.s32 %s13, 2
      %s29 = sadd.s32 1, %s22
      %p30 = scmp.ge.s32.totalorder %s29, 1
      %s31 = scalar_select %p30, 0, %s29
      %s32 = sadd.s32 1, %s21
      %s33 = scalar_select %p30, %s32, %s21
      %p34 = scmp.ge.s32.totalorder %s33, 1
      %s35 = scalar_select %p34, 0, %s33
      %s36 = sadd.s32 1, %s20
      %s37 = scalar_select %p34, %s36, %s20
      %p38 = scmp.ge.s32.totalorder %s37, 2
      %s39 = scalar_select %p38, 0, %s37
      %s40 = ssub.s32 %s20, %s39
      %s41 = ssub.s32 %s22, %s31
      %s42 = sor.u32 %s40, %s41
      %p43 = scmp.eq.s32.totalorder %s42, 0
      %s45 = sadd.s32 %s44, 1
      %s46 = scalar_select %p43, %s44, %s45
      %p49 = pneg %p43
      %p50 = scmp.eq.s32.totalorder %s13, 1
      %p51 = por %p49, %p50
      %p52 = scmp.ne.s32.totalorder %s44, %s47
      %p53 = scmp.eq.s32.totalorder %s13, 0
      %p54 = por %p52, %p53
      %p55 = scmp.ne.s32.totalorder %s44, %s47
      %p56 = scmp.eq.s32.totalorder %s18, 1
      %p57 = por %p55, %p56
      %p58 = scmp.ne.s32.totalorder %s47, %s48
      %p59 = scmp.eq.s32.totalorder %s18, 0
      %p60 = por %p58, %p59
      %p61 = scmp.ne.s32.totalorder %s47, %s48
      %p62 = scmp.eq.s32.totalorder %s19, 1
      %p63 = por %p61, %p62
      %p65 = scmp.ne.s32.totalorder %s48, %s64
      %p66 = scmp.eq.s32.totalorder %s19, 0
      %p67 = por %p65, %p66
      %s68 = ssub.s32 %s22, %s31
      %s69 = ssub.s32 %s21, %s35
      %s70 = sor.u32 %s68, %s69
      %p71 = scmp.eq.s32.totalorder %s70, 0
      %s73 = sadd.s32 %s72, 1
      %s74 = scalar_select %p71, %s72, %s73
      %p77 = pneg %p71
      %p78 = scmp.eq.s32.totalorder %s13, 1
      %p79 = por %p77, %p78
      %p80 = scmp.ne.s32.totalorder %s72, %s75
      %p81 = scmp.eq.s32.totalorder %s13, 0
      %p82 = por %p80, %p81
      %p83 = scmp.ne.s32.totalorder %s72, %s75
      %p84 = scmp.eq.s32.totalorder %s18, 1
      %p85 = por %p83, %p84
      %p86 = scmp.ne.s32.totalorder %s75, %s76
      %p87 = scmp.eq.s32.totalorder %s18, 0
      %p88 = por %p86, %p87
      %p89 = scmp.ne.s32.totalorder %s75, %s76
      %p90 = scmp.eq.s32.totalorder %s19, 1
      %p91 = por %p89, %p90
      %p93 = scmp.ne.s32.totalorder %s76, %s92
      %p94 = scmp.eq.s32.totalorder %s19, 0
      %p95 = por %p93, %p94
      %s96 = ssub.s32 %s21, %s35
      %p97 = scmp.eq.s32.totalorder %s96, 0
      %s99 = sadd.s32 %s98, 1
      %s100 = scalar_select %p97, %s98, %s99
      %p103 = pneg %p97
      %p104 = scmp.eq.s32.totalorder %s13, 1
      %p105 = por %p103, %p104
      %p106 = scmp.ne.s32.totalorder %s98, %s101
      %p107 = scmp.eq.s32.totalorder %s13, 0
      %p108 = por %p106, %p107
      %p109 = scmp.ne.s32.totalorder %s98, %s101
      %p110 = scmp.eq.s32.totalorder %s18, 1
      %p111 = por %p109, %p110
      %p112 = scmp.ne.s32.totalorder %s101, %s102
      %p113 = scmp.eq.s32.totalorder %s18, 0
      %p114 = por %p112, %p113
      %p115 = scmp.ne.s32.totalorder %s101, %s102
      %p116 = scmp.eq.s32.totalorder %s19, 1
      %p117 = por %p115, %p116
      %p119 = scmp.ne.s32.totalorder %s102, %s118
      %p120 = scmp.eq.s32.totalorder %s19, 0
      %p121 = por %p119, %p120
      %s122 = ssub.s32 %s20, %s39
      %s123 = ssub.s32 %s21, %s35
      %s124 = sor.u32 %s122, %s123
      %p125 = scmp.eq.s32.totalorder %s124, 0
      %s127 = sadd.s32 %s126, 1
      %s128 = scalar_select %p125, %s126, %s127
      %p131 = pneg %p125
      %p132 = scmp.eq.s32.totalorder %s13, 1
      %p133 = por %p131, %p132
      %p134 = scmp.ne.s32.totalorder %s126, %s129
      %p135 = scmp.eq.s32.totalorder %s13, 0
      %p136 = por %p134, %p135
      %p137 = scmp.ne.s32.totalorder %s126, %s129
      %p138 = scmp.eq.s32.totalorder %s18, 1
      %p139 = por %p137, %p138
      %p140 = scmp.ne.s32.totalorder %s129, %s130
      %p141 = scmp.eq.s32.totalorder %s18, 0
      %p142 = por %p140, %p141
      %p143 = scmp.ne.s32.totalorder %s129, %s130
      %p144 = scmp.eq.s32.totalorder %s19, 1
      %p145 = por %p143, %p144
      %p147 = scmp.ne.s32.totalorder %s130, %s146
      %p148 = scmp.eq.s32.totalorder %s19, 0
      %p149 = por %p147, %p148
      %p150 = scmp.le.s32.totalorder 1, %s13
      %p151 = scmp.lt.s32.totalorder %s13, 3
      %p152 = pnand %p150, %p151
      %p153 = pneg %p152
      // Predicated region
      $region9: #{upcast_linear.1} parent=5 // pred_check
        _
      $region10: #{upcast_linear.1} parent=5 // pred_check_branch
        %155 = sbr.rel (%p152) target = $region12
      $region11: #{upcast_linear.1} parent=5 // pred_region
        %s156 = ssub.s32 %s13, 1
        // Predicated region
        $region13: #{upcast_linear.1} parent=11 // pred_check
          %p157 = pneg %p88
        $region14: #{upcast_linear.1} parent=11 // pred_check_branch
          %159 = sbr.rel (%p157) target = $region16
        $region15: #{upcast_linear.1} parent=11 // pred_region
          %s160 = smul.u32 16, %s25
          %s162 = ssub.s32 1024, 1024
          %163 = vsyncadd [#allocation3], %s162
          %s164 = sadd.s32 %s24, %s160
          %s165 = smul.addr %s164, 64
          %s166 = scalar_lea.hbm %s1, %s165
          %s167 = sshll.u32 [#allocation2], 4
          %s168 = int_to_ptr.vmem [resolvable:$true] %s167
          %173 = dma.hbm_to_vmem [thread:$0]  %s166, 1024, %s168, [#allocation3], 64, 64, 4
        $region16: #{upcast_linear.1} parent=11 // pred_fallthru
          _
        // Predicated region
        $region17: #{upcast_linear.1} parent=11 // pred_check
          %p174 = pneg %p114
        $region18: #{upcast_linear.1} parent=11 // pred_check_branch
          %176 = sbr.rel (%p174) target = $region20
        $region19: #{upcast_linear.1} parent=11 // pred_region
          %p177 = scmp.lt.s32.totalorder %s24, 0
          %s178 = scalar_select %p177, %s24, 0
          %s179 = scalar_lea.vmem %s2, %s178
        $region20: #{upcast_linear.1} parent=11 // pred_fallthru
          _
      $region12: #{upcast_linear.1} parent=5 // pred_fallthru
        _
      %p180 = scmp.lt.s32.totalorder %s13, 2
      // Predicated region
      $region21: #{upcast_linear.1} parent=5 // pred_check
        %p181 = pneg %p180
      $region22: #{upcast_linear.1} parent=5 // pred_check_branch
        %183 = sbr.rel (%p181) target = $region24
      $region23: #{upcast_linear.1} parent=5 // pred_region
        // Predicated region
        $region25: #{upcast_linear.1} parent=23 // pred_check
          %p184 = pneg %p54
        $region26: #{upcast_linear.1} parent=23 // pred_check_branch
          %186 = sbr.rel (%p184) target = $region28
        $region27: #{upcast_linear.1} parent=23 // pred_region
          %p187 = scmp.lt.s32.totalorder %s20, 1
          %s188 = scalar_select %p187, %s20, 1
          %p189 = scmp.lt.s32.totalorder %s22, 0
          %s190 = scalar_select %p189, %s22, 0
          %s191 = sadd.s32 %s190, %s188
          %s192 = smul.addr %s191, 4
          %s193 = scalar_lea.vmem %s0, %s192
        $region28: #{upcast_linear.1} parent=23 // pred_fallthru
          _
      $region24: #{upcast_linear.1} parent=5 // pred_fallthru
        _
      %p194 = scmp.le.s32.totalorder 1, %s13
      %p195 = scmp.lt.s32.totalorder %s13, 3
      %p196 = pnand %p194, %p195
      %p197 = pneg %p196
      // Predicated region
      $region29: #{upcast_linear.1} parent=5 // pred_check
        _
      $region30: #{upcast_linear.1} parent=5 // pred_check_branch
        %199 = sbr.rel (%p196) target = $region32
      $region31: #{upcast_linear.1} parent=5 // pred_region
        %s200 = ssub.s32 %s13, 1
        // Predicated region
        $region33: #{upcast_linear.1} parent=31 // pred_check
          %p201 = pneg %p88
        $region34: #{upcast_linear.1} parent=31 // pred_check_branch
          %203 = sbr.rel (%p201) target = $region36
        $region35: #{upcast_linear.1} parent=31 // pred_region
          %204 = dma.done [#allocation3], 1024
        $region36: #{upcast_linear.1} parent=31 // pred_fallthru
          _
        %p205 = scmp.lt.s32.totalorder %s23, 1
        %s206 = scalar_select %p205, %s23, 1
        %p207 = scmp.lt.s32.totalorder %s25, 0
        %s208 = scalar_select %p207, %s25, 0
        %s209 = sadd.s32 %s208, %s206
        %s210 = smul.addr %s209, 4
        %s211 = scalar_lea.vmem %s0, %s210
        %p212 = pneg %p60
        %p213 = pneg %p57
        %p214 = pneg %p88
        %p215 = pneg %p85
        %p216 = scmp.lt.s32.totalorder %s24, 0
        %s217 = scalar_select %p216, %s24, 0
        %s218 = scalar_lea.vmem %s2, %s217
        %p219 = pneg %p114
        %p220 = pneg %p111
        %p221 = pneg %p142
        %p222 = pneg %p139
        %s223 = sand.u32 %s129, 1
        %s224 = scalar_lea.sflag [#allocation4], %s223
        %s225 = sand.u32 %s129, 1
        %s226 = smul.addr %s225, 8
        %s227 = scalar_lea.vmem [#allocation5], %s226
        %p228 = scmp.lt.s32.totalorder %s23, 1
        %s229 = scalar_select %p228, %s23, 1
        %p230 = scmp.lt.s32.totalorder %s25, 0
        %s231 = scalar_select %p230, %s25, 0
        %s232 = sadd.s32 %s231, %s229
        %s233 = smul.addr %s232, 4
        %s234 = scalar_lea.vmem %s0, %s233
        %s235 = smul.u32 16, %s25
        %p236 = scmp.lt.s32.totalorder %s24, 0
        %s237 = scalar_select %p236, %s24, 0
        %s238 = scalar_lea.vmem %s2, %s237
        %p240 = scmp.eq.s32.totalorder %s25, 0
        // Predicated region
        $region37: #{upcast_linear.1} parent=31 // pred_check
          %p241 = pneg %p240
        $region38: #{upcast_linear.1} parent=31 // pred_check_branch
          %243 = sbr.rel (%p241) target = $region40
        $region39: #{upcast_linear.1} parent=31 // pred_region
          %244 = vst [vmem:[%s227] sm:$0xff] 0.0
        $region40: #{upcast_linear.1} parent=31 // pred_fallthru
          _
        %v245 = vld [vmem:[%s227] sm:$0xff]
        %v246 = vld [vmem:[%s234] sm:$0xf]
        %v247 = vld [vmem:[#allocation2] sm:$0xf]
        %v248 = vld [vmem:[#allocation2 + $0x4] sm:$0xf]
        %v249 = vld [vmem:[#allocation2 + $0x8] sm:$0xf]
        %v250 = vld [vmem:[#allocation2 + $0xc] sm:$0xf]
        %v251 = vld [vmem:[#allocation2 + $0x10] sm:$0xf]
        %v252 = vld [vmem:[#allocation2 + $0x14] sm:$0xf]
        %v253 = vld [vmem:[#allocation2 + $0x18] sm:$0xf]
        %v254 = vld [vmem:[#allocation2 + $0x1c] sm:$0xf]
        %v255 = vld [vmem:[#allocation2 + $0x20] sm:$0xf]
        %v256 = vld [vmem:[#allocation2 + $0x24] sm:$0xf]
        %v257 = vld [vmem:[#allocation2 + $0x28] sm:$0xf]
        %v258 = vld [vmem:[#allocation2 + $0x2c] sm:$0xf]
        %v259 = vld [vmem:[#allocation2 + $0x30] sm:$0xf]
        %v260 = vld [vmem:[#allocation2 + $0x34] sm:$0xf]
        %v261 = vld [vmem:[#allocation2 + $0x38] sm:$0xf]
        %v262 = vld [vmem:[#allocation2 + $0x3c] sm:$0xf]
        %v279 = vunpack.c.l.b16 %v247
        %v280 = vunpack.c.l.b16 %v248
        %v281 = vunpack.c.l.b16 %v249
        %v282 = vunpack.c.l.b16 %v250
        %v283 = vunpack.c.l.b16 %v251
        %v284 = vunpack.c.l.b16 %v252
        %v285 = vunpack.c.l.b16 %v253
        %v286 = vunpack.c.l.b16 %v254
        %v287 = vunpack.c.l.b16 %v255
        %v288 = vunpack.c.l.b16 %v256
        %v289 = vunpack.c.l.b16 %v257
        %v290 = vunpack.c.l.b16 %v258
        %v291 = vunpack.c.l.b16 %v259
        %v292 = vunpack.c.l.b16 %v260
        %v293 = vunpack.c.l.b16 %v261
        %v294 = vunpack.c.l.b16 %v262
        %v295 = vpack.c.b16 %v280, %v279
        %v296 = vpack.c.b16 %v282, %v281
        %v297 = vpack.c.b16 %v284, %v283
        %v298 = vpack.c.b16 %v286, %v285
        %v299 = vpack.c.b16 %v288, %v287
        %v300 = vpack.c.b16 %v290, %v289
        %v301 = vpack.c.b16 %v292, %v291
        %v302 = vpack.c.b16 %v294, %v293
        %311 = vmatprep.subr.bf16.mxu0 0
        %312 = vmatpush1.bf16.msra.mxu0 %v295
        %313 = vmatprep.subr.bf16.mxu0 0
        %314 = vmatpush1.bf16.msra.mxu0 %v296
        %315 = vmatprep.subr.bf16.mxu0 0
        %316 = vmatpush1.bf16.msra.mxu0 %v297
        %317 = vmatprep.subr.bf16.mxu0 0
        %318 = vmatpush1.bf16.msra.mxu0 %v298
        %319 = vmatprep.subr.bf16.mxu0 0
        %320 = vmatpush1.bf16.msra.mxu0 %v299
        %321 = vmatprep.subr.bf16.mxu0 0
        %322 = vmatpush1.bf16.msra.mxu0 %v300
        %323 = vmatprep.subr.bf16.mxu0 0
        %324 = vmatpush1.bf16.msra.mxu0 %v301
        %325 = vmatprep.subr.bf16.mxu0 0
        %326 = vmatpush1.bf16.msra.mxu0 %v302
        %327 = vmatprep.subr.bf16.mxu0 0
        %328 = vmatpush1.bf16.msra.mxu0 0
        %329 = vmatprep.subr.bf16.mxu0 0
        %330 = vmatpush1.bf16.msra.mxu0 0
        %331 = vmatprep.subr.bf16.mxu0 0
        %332 = vmatpush1.bf16.msra.mxu0 0
        %333 = vmatprep.subr.bf16.mxu0 0
        %334 = vmatpush1.bf16.msra.mxu0 0
        %335 = vmatprep.subr.bf16.mxu0 0
        %336 = vmatpush1.bf16.msra.mxu0 0
        %337 = vmatprep.subr.bf16.mxu0 0
        %338 = vmatpush1.bf16.msra.mxu0 0
        %339 = vmatprep.subr.bf16.mxu0 0
        %340 = vmatpush1.bf16.msra.mxu0 0
        %341 = vmatprep.subr.bf16.mxu0 0
        %342 = vmatpush1.bf16.msra.mxu0 0
        %343 = vmatprep.mubr.bf16.mxu0 0
        %344 = vmatmul.mubr.bf16.gmra.mrb[0].mxu0 %v246
        %v345 = vpop.f32.mrb[0].mxu0
        %v346 = vadd.f32 0.0, %v345
        %v347 = vpop.f32.mrb[0].mxu0
        %v348 = vpop.f32.mrb[0].mxu0
        %v349 = vpop.f32.mrb[0].mxu0
        %350 = vdwg.mxu0
        %v351 = vadd.f32 %v245, %v346
        %352 = vst [vmem:[%s227] sm:$0xff] %v351
        // Predicated region
        $region41: #{upcast_linear.1} parent=31 // pred_check
          %p353 = pneg %p240
        $region42: #{upcast_linear.1} parent=31 // pred_check_branch
          %355 = sbr.rel (%p353) target = $region44
        $region43: #{upcast_linear.1} parent=31 // pred_region
          %v356 = vld [vmem:[%s227] sm:$0xff]
          %v357 = vmul.f32 %v356, 2.0
          %v358 = vld [vmem:[%s238] sm:$0x1]
          %v360 = vlaneseq
          %v361 = vshrl.u32 %v360, 7
          %v362 = vsub.s32 0, %v361
          %v363 = vrot.slane %v358, %v362
          %v365 = vadd.f32 %v357, %v363
          %366 = vst [vmem:[%s227] sm:$0xff] %v365
        $region44: #{upcast_linear.1} parent=31 // pred_fallthru
          _
        %s367 = sand.u32 %s129, 1
        %s368 = scalar_lea.sflag [#allocation4], %s367
        %s369 = sand.u32 %s129, 1
        %s370 = smul.addr %s369, 8
        %s371 = scalar_lea.vmem [#allocation5], %s370
        // Predicated region
        $region45: #{upcast_linear.1} parent=31 // pred_check
          %p372 = pneg %p139
        $region46: #{upcast_linear.1} parent=31 // pred_check_branch
          %374 = sbr.rel (%p372) target = $region48
        $region47: #{upcast_linear.1} parent=31 // pred_region
          %s376 = ssub.s32 128, 128
          %377 = vsyncadd %s368, %s376
          %s378 = sadd.s32 %s24, %s23
          %s379 = smul.addr %s378, 128
          %s380 = scalar_lea.hbm %s3, %s379
          %s382 = sshll.u32 %s371, 4
          %s383 = int_to_ptr.vmem [resolvable:$true] %s382
          %385 = dma.vmem_to_hbm [thread:$0]  %s383, 128, %s380, %s368
        $region48: #{upcast_linear.1} parent=31 // pred_fallthru
          _
      $region32: #{upcast_linear.1} parent=5 // pred_fallthru
        _
      %p386 = scmp.le.s32.totalorder 2, %s13
      // Predicated region
      $region49: #{upcast_linear.1} parent=5 // pred_check
        %p387 = pneg %p386
      $region50: #{upcast_linear.1} parent=5 // pred_check_branch
        %389 = sbr.rel (%p387) target = $region52
      $region51: #{upcast_linear.1} parent=5 // pred_region
        %s390 = ssub.s32 %s13, 2
        // Predicated region
        $region53: #{upcast_linear.1} parent=51 // pred_check
          %p391 = pneg %p145
        $region54: #{upcast_linear.1} parent=51 // pred_check_branch
          %393 = sbr.rel (%p391) target = $region56
        $region55: #{upcast_linear.1} parent=51 // pred_region
          %s394 = sand.u32 %s130, 1
          %s395 = scalar_lea.sflag [#allocation4], %s394
          %s396 = sand.u32 %s130, 1
          %s397 = smul.addr %s396, 8
          %s398 = scalar_lea.vmem [#allocation5], %s397
          %399 = dma.done %s395, 128
        $region56: #{upcast_linear.1} parent=51 // pred_fallthru
          _
      $region52: #{upcast_linear.1} parent=5 // pred_fallthru
        _
    $region6: #{upcast_linear.1} parent=1 // loop_footer
      %s17 = sadd.s32 1, %s13
    $region7: #{upcast_linear.1} parent=1 // loop_footer_branch
      %12 = sbr.rel target = $region3
    $region8: #{upcast_linear.1} parent=1 // loop_exit
      _
    %400 = vsyncpa [#allocation3], 1
    %s401 = scalar_lea.sflag [#allocation3], 1
    %402 = vsyncpa %s401, 1
    %403 = vsyncpa [#allocation4], 1
    %s404 = scalar_lea.sflag [#allocation4], 1
    %405 = vsyncpa %s404, 1

</llo_original>
